<compile_context>
chip_gen: v7x
topology: tpu7x:2x2x1
jax: 0.10.0
libtpu: 0.0.40
codegen_flags: <defaults>
</compile_context>

<pallas_src>
import jax
import jax.numpy as jnp
from jax.experimental import pallas as pl
from jax.experimental.pallas import tpu as pltpu

_LANES = 128            # vreg lane width
_SUBLANES = 8           # vreg sublane depth (f32)
_MAX_BLOCK_ROWS = 8192  # (8192, 128) f32 block = 4 MiB; 2x-buffered = 8 MiB VMEM
_FAST_PATH_BYTES = 2 << 20  # below ~2 MiB of output, jnp.full wins over pallas_call


def _round_up(a: int, m: int) -> int:
    return -(-a // m) * m


def _single_variance_kernel(e_ref, o_ref):
    # e_ref: SMEM (1,) f32 -- precomputed exp(10 * variance)
    # o_ref: VMEM (block_rows, 128) f32 output tile (lane+sublane dense)
    # Pure broadcast fill: VPU splat + unmasked vector stores.
    o_ref[...] = jnp.full(o_ref.shape, e_ref[0], dtype=jnp.float32)


def single_variance_forward(x, variance, *, min_pallas_bytes: int = _FAST_PATH_BYTES):
    """Pallas implementation of SingleVarianceNetwork.forward.

    Args:
      x: array whose leading dim N determines the output length (values unused).
      variance: scalar parameter (Python float or 0-d array).
      min_pallas_bytes: below this output size, use a fused jnp.full fast path
        instead of launching a Pallas kernel (set to 0 to force the kernel).
    Returns:
      f32 array of shape (N,), every element = exp(variance * 10).
    """
    n = x.shape[0]
    # Hoist the single transcendental: one scalar exp in the wrapper.
    e = jnp.exp(jnp.asarray(variance, jnp.float32) * 10.0)

    if n == 0:
        # Mosaic can't lower a zero-sized block; semantics are trivially empty.
        return jnp.zeros((0,), jnp.float32)

    if n * 4 < min_pallas_bytes:
        # Small-N fast path: launch overhead dominates; let XLA fuse the fill.
        return jnp.full((n,), e, dtype=jnp.float32)

    # Exact lane+sublane-dense slab: rows rounded up only to a sublane multiple.
    rows = _round_up(-(-n // _LANES), _SUBLANES)

    # At least 2 grid steps when there is more than one sublane tile of work,
    # so v7x's two TensorCores both get a share of the "parallel" axis; cap the
    # block at 4 MiB to amortize per-step overhead without stressing VMEM.
    half = _round_up(-(-rows // 2), _SUBLANES)
    block_rows = min(_MAX_BLOCK_ROWS, max(_SUBLANES, half))
    grid = -(-rows // block_rows)

    out = pl.pallas_call(
        _single_variance_kernel,
        out_shape=jax.ShapeDtypeStruct((rows, _LANES), jnp.float32),
        grid=(grid,),
        in_specs=[pl.BlockSpec(memory_space=pltpu.SMEM)],
        out_specs=pl.BlockSpec((block_rows, _LANES), lambda i: (i, 0)),
        compiler_params=pltpu.CompilerParams(
            dimension_semantics=("parallel",)),
        cost_estimate=pl.CostEstimate(
            flops=0,
            transcendentals=0,
            bytes_accessed=4 * rows * _LANES),
    )(e.reshape((1,)))

    if rows * _LANES == n:
        # Exactly tile-aligned: no extra slice / HBM pass.
        return out.reshape(-1)
    # TODO(synk): for unaligned N this slice is a second HBM pass; callers that
    # can consume the padded (rows, 128) slab directly should do so instead.
    return out.reshape(-1)[:n]


if __name__ == "__main__":
    key = jax.random.PRNGKey(0)
    # Deterministic parameter init (matches nn.Parameter(torch.tensor(init_val))).
    init_val = 0.3
    variance = jnp.float32(init_val)
    expected = jnp.exp(variance * 10.0)

    # 1) Typical small SDF batch: only len(x) matters. Default path (jnp.full
    #    fast path, since launch overhead would dominate a Pallas call).
    x = jax.random.normal(key, (8, 3), dtype=jnp.float32)
    out = jax.block_until_ready(single_variance_forward(x, variance))
    ref = jnp.ones((x.shape[0],), jnp.float32) * expected
    assert out.shape == (x.shape[0],), out.shape
    assert jnp.allclose(out, ref, rtol=1e-6, atol=1e-6), (out, ref)

    # 2) Force the Pallas kernel at the same small shape (exercises the kernel,
    #    SMEM scalar input, and the wrapper slice for unaligned N).
    out_p = jax.block_until_ready(
        single_variance_forward(x, variance, min_pallas_bytes=0))
    assert out_p.shape == (x.shape[0],), out_p.shape
    assert jnp.allclose(out_p, ref, rtol=1e-6, atol=1e-6), (out_p, ref)

    # 3) Non-tile-aligned size through the Pallas path (padding + slice),
    #    with a plain-Python-float parameter.
    x2 = jax.random.normal(key, (300, 3), dtype=jnp.float32)
    out2 = jax.block_until_ready(
        single_variance_forward(x2, 0.3, min_pallas_bytes=0))
    ref2 = jnp.ones((300,), jnp.float32) * expected
    assert out2.shape == (300,), out2.shape
    assert jnp.allclose(out2, ref2, rtol=1e-6, atol=1e-6)

    # 4) Tile-aligned size (2048 = 16 rows * 128): multi-step grid, no slice.
    x3 = jax.random.normal(key, (2048, 3), dtype=jnp.float32)
    out3 = jax.block_until_ready(
        single_variance_forward(x3, variance, min_pallas_bytes=0))
    ref3 = jnp.full((2048,), expected, dtype=jnp.float32)
    assert out3.shape == (2048,), out3.shape
    assert jnp.allclose(out3, ref3, rtol=1e-6, atol=1e-6)

    # 5) Size whose row count is not a multiple of block_rows (ragged last
    #    block, masked writeback by Pallas).
    x4 = jax.random.normal(key, (3000, 3), dtype=jnp.float32)
    out4 = jax.block_until_ready(
        single_variance_forward(x4, variance, min_pallas_bytes=0))
    ref4 = jnp.full((3000,), expected, dtype=jnp.float32)
    assert out4.shape == (3000,), out4.shape
    assert jnp.allclose(out4, ref4, rtol=1e-6, atol=1e-6)

    print("KERNEL_OK")
</pallas_src>

<mosaic_0001>
module attributes {stable_mosaic.version = 11 : i64} {
  func.func @_single_variance_kernel(%arg0: i32, %arg1: memref<1xf32, #tpu.memory_space<smem>>, %arg2: memref<8x128xf32, #tpu.memory_space<vmem>>) attributes {dimension_semantics = [#tpu.dimension_semantics<parallel>], iteration_bounds = array<i64: 1>, scalar_prefetch = 0 : i64, scratch_operands = 0 : i64, tpu.core_type = #tpu.core_type<tc>, window_params = [{transform_indices = @transform_0, window_bounds = array<i64: 1>}, {transform_indices = @transform_1, window_bounds = array<i64: 8, 128>}]} {
    %c0 = arith.constant 0 : index
    %0 = memref.load %arg1[%c0] : memref<1xf32, #tpu.memory_space<smem>>
    %1 = vector.broadcast %0 : f32 to vector<8x128xf32>
    %c0_0 = arith.constant 0 : index
    %c0_1 = arith.constant 0 : index
    %2 = vector.load %arg2[%c0_0, %c0_1] : memref<8x128xf32, #tpu.memory_space<vmem>>, vector<8x128xf32>
    tpu.vector_store %arg2[%c0_0, %c0_1], %1 {strides = array<i32>} : memref<8x128xf32, #tpu.memory_space<vmem>>, vector<8x128xf32>,
    return
  }
  func.func @transform_0(%arg0: i32) -> i32 {
    %c0_i32 = arith.constant 0 : i32
    %c0_i32_0 = arith.constant 0 : i32
    return %c0_i32 : i32
  }
  func.func @transform_1(%arg0: i32) -> (i32, i32) {
    %c0_i32 = arith.constant 0 : i32
    %c0_i32_0 = arith.constant 0 : i32
    return %arg0, %c0_i32 : i32, i32
  }
}

</mosaic_0001>

<llo_original>
// kernel: tpu_custom_call.1
$region0: #{tpu_custom_call.1}
  #allocation0 [shape = 'u32[]', space=smem, size = 0x4, offset = 0x4, fixed_abs, tag = 'smem constant byte address 0x4 - core index']
  #allocation1 [shape = 'u32[144,128]{1,0:T(1,128)}', space=vmem, size = 0x12000, scoped, tag = 'internal scratch']
  #allocation2 [shape = 'f32[1]{0:T(128)S(6)}', space=smem, size = 0x200, scoped, tag = 'scoped memory for tpu_custom_call.1']
  %s0 = inlined_call_operand.<no memory space> [shape: f32[1], index: 0, kind: input, shape index: {}]
  %s1 = inlined_call_operand.hbm [shape: f32[8,128], index: 1, kind: output, shape index: {}]
  %s2 = sld [smem:[#allocation0]]
  $region14: #{tpu_custom_call.1} parent=0
    _
  %s4 = ssub.s32 1, %s2
  %s5 = scalar_select 0, %s4, %s2
  %6 = sst [smem:[#allocation2]] %s0
  $region1: #{tpu_custom_call.1} parent=0
    #allocation3 [shape = 'u8[4096]{0}', space=vmem, size = 0x1000, scoped, tag = 'output window, operand 0, single buffered']
    #allocation4 [shape = 's32[1]{0}', space=sflag, size = 0x4, scoped, tag = 'scoped memory for tpu_custom_call.1']
    %7 = vsyncpa [#allocation4], 0
    // Predicated region
    $region2: #{tpu_custom_call.1} parent=1 // pred_check
      _
    $region3: #{tpu_custom_call.1} parent=1 // pred_check_branch
      %9 = sbr.rel (0) target = $region5
    $region4: #{tpu_custom_call.1} parent=1 // pred_region
      _
    $region5: #{tpu_custom_call.1} parent=1 // pred_fallthru
      _
    %s10 = sld [smem:[#allocation2]]
    %v11 = vstv %s10
    %12 = vst [vmem:[#allocation3] sm:$0xff] %v11
    // Predicated region
    $region6: #{tpu_custom_call.1} parent=1 // pred_check
      _
    $region7: #{tpu_custom_call.1} parent=1 // pred_check_branch
      %14 = sbr.rel (0) target = $region9
    $region8: #{tpu_custom_call.1} parent=1 // pred_region
      %s16 = ssub.s32 128, 128
      %17 = vsyncadd [#allocation4], %s16
      %s19 = sshll.u32 [#allocation3], 4
      %s20 = int_to_ptr.vmem [resolvable:$true] %s19
      %22 = dma.vmem_to_hbm [thread:$0]  %s20, 128, %s1, [#allocation4]
    $region9: #{tpu_custom_call.1} parent=1 // pred_fallthru
      _
    // Predicated region
    $region10: #{tpu_custom_call.1} parent=1 // pred_check
      _
    $region11: #{tpu_custom_call.1} parent=1 // pred_check_branch
      %24 = sbr.rel (0) target = $region13
    $region12: #{tpu_custom_call.1} parent=1 // pred_region
      %25 = dma.done [#allocation4], 128
    $region13: #{tpu_custom_call.1} parent=1 // pred_fallthru
      _
    %26 = vsyncpa [#allocation4], 1

</llo_original>
